<compile_context>
chip_gen: v6e
topology: v6e:2x2x1
jax: 0.10.0
libtpu: 0.0.40
codegen_flags: <defaults>
</compile_context>

<pallas_src>
import functools

import jax
import jax.numpy as jnp
from jax import lax
from jax.experimental import pallas as pl
from jax.experimental.pallas import tpu as pltpu

KERNEL_SIZE = 3   # matches ContourLoss(kernel_size=3)
_LANE = 128


def _round_up(x, m):
    return (x + m - 1) // m * m


def _sublane_tile(dtype):
    # 32-bit dtypes tile sublanes by 8; 16-bit by 16; 8-bit by 32.
    return max(8, 32 // jnp.dtype(dtype).itemsize)


def _contour_mse_kernel(x_ref, y_ref, o_ref, *, h, w):
    """One grid step: b_nc flattened (H*W,) planes, one plane per sublane row.

    Computes the 3x3 contour of both inputs (separable dilate/erode as lane
    shifts) and the partial sum of squared differences over the valid
    (H-2)x(W-2) output positions of every plane in the block.
    """
    hw = h * w
    x = x_ref[0].astype(jnp.float32)   # (b_nc, H*W)
    y = y_ref[0].astype(jnp.float32)

    def contour(a):
        # Column (lane) pass: window max/min over flat offsets {0, 1, 2}.
        # Positions whose 3-wide window wraps to the next image row produce
        # junk that is masked out of the loss below; planes never mix because
        # each plane is its own sublane row and all shifts are lane shifts.
        c0 = a[:, 0:hw - 2]
        c1 = a[:, 1:hw - 1]
        c2 = a[:, 2:hw]
        cmax = jnp.maximum(jnp.maximum(c0, c1), c2)
        cmin = jnp.minimum(jnp.minimum(c0, c1), c2)
        # Row pass: window max/min over flat offsets {0, w, 2w} (stays inside
        # the plane for every valid output row).
        span = hw - 2 * w - 2   # == (h - 2) * w - 2
        rmax = jnp.maximum(jnp.maximum(cmax[:, 0:span], cmax[:, w:w + span]),
                           cmax[:, 2 * w:2 * w + span])
        rmin = jnp.minimum(jnp.minimum(cmin[:, 0:span], cmin[:, w:w + span]),
                           cmin[:, 2 * w:2 * w + span])
        # ReLU dropped: rmax >= rmin over the same window, so relu is a no-op.
        return rmax - rmin   # (b_nc, (h-2)*w - 2)

    d = contour(x) - contour(y)

    # Flat position p maps to window top-left (p // w, p % w); the row index is
    # always <= h-3 within this span, so only the column condition is masked.
    col = lax.broadcasted_iota(jnp.int32, d.shape, 1) % w
    valid = col <= (w - KERNEL_SIZE)
    partial = jnp.sum(jnp.where(valid, d * d, 0.0))

    # One small lane-dense (1, 8, 128) tile per grid step (unmasked vst); the
    # wrapper reads [:, 0, 0] and finishes the mean.
    o_ref[...] = jnp.full(o_ref.shape, partial, dtype=o_ref.dtype)


def _vmem_capacity_bytes():
    """Per-core VMEM capacity; conservative (v7x) fallback if unavailable."""
    try:
        cap = getattr(pltpu.get_tpu_info(), "vmem_capacity_bytes", None)
        if cap:
            return int(cap)
    except Exception:
        pass
    return 64 * 1024 * 1024


def _padded_block_bytes(b_nc, hw, dtype):
    """VMEM footprint of one (1, b_nc, hw) block after sublane/lane padding."""
    itemsize = jnp.dtype(dtype).itemsize
    return _round_up(b_nc, _sublane_tile(dtype)) * _round_up(hw, _LANE) * itemsize


# Estimated number of simultaneously-live block-sized f32 temporaries inside
# the kernel (upcasts, cmax/cmin, rmax/rmin, d); used for VMEM budgeting so the
# chosen block never spills, on v7x's 64 MiB VMEM in particular.
_TEMP_F32_BLOCKS = 6


def _choose_planes_per_block(nc, hw, in_dtype, budget_bytes):
    """Largest divisor of nc whose padded block cost fits the VMEM budget,
    preferring grid >= 2 (pipelining + v7x two-TensorCore sharding) and an
    even grid step count."""
    def cost(b):
        return (4 * _padded_block_bytes(b, hw, in_dtype)                 # 2 in x 2 bufs
                + _TEMP_F32_BLOCKS * _padded_block_bytes(b, hw, jnp.float32))

    fitting = [b for b in range(1, nc + 1)
               if nc % b == 0 and cost(b) <= budget_bytes]
    if not fitting:
        return 1                       # single-plane blocks; nothing smaller exists
    multi = [b for b in fitting if nc // b >= 2]
    if multi:
        even = [b for b in multi if (nc // b) % 2 == 0]
        return max(even) if even else max(multi)
    return max(fitting)                # nc == 1


def contour_loss(outputs, targets):
    """Pallas TPU implementation of ContourLoss.forward (kernel_size=3)."""
    assert outputs.shape == targets.shape, (outputs.shape, targets.shape)
    n, c, h, w = outputs.shape
    assert h >= KERNEL_SIZE and w >= KERNEL_SIZE, "spatial dims must be >= 3"

    nc = n * c
    hw = h * w

    # Per-generation scoped-VMEM budget: 3/4 of capacity (96 MiB on v5e/v6e's
    # 128 MiB, 48 MiB on v7x's 64 MiB), minus a little headroom for outputs.
    vmem_cap = _vmem_capacity_bytes()
    vmem_limit = (vmem_cap * 3) // 4
    budget = vmem_limit - 2 * 1024 * 1024

    b_nc = _choose_planes_per_block(nc, hw, outputs.dtype, budget)
    grid = nc // b_nc

    # Lane-dense layout (zero-copy reshape): (grid, planes_per_block, H*W).
    x = outputs.reshape(grid, b_nc, hw)
    y = targets.reshape(grid, b_nc, hw)

    partials = pl.pallas_call(
        functools.partial(_contour_mse_kernel, h=h, w=w),
        out_shape=jax.ShapeDtypeStruct((grid, 8, _LANE), jnp.float32),
        grid_spec=pltpu.PrefetchScalarGridSpec(
            num_scalar_prefetch=0,
            grid=(grid,),
            in_specs=[
                pl.BlockSpec((1, b_nc, hw), lambda g: (g, 0, 0)),
                pl.BlockSpec((1, b_nc, hw), lambda g: (g, 0, 0)),
            ],
            out_specs=pl.BlockSpec((1, 8, _LANE), lambda g: (g, 0, 0)),
        ),
        compiler_params=pltpu.CompilerParams(
            dimension_semantics=("parallel",),
            vmem_limit_bytes=int(vmem_limit),
        ),
    )(x, y)

    count = nc * (h - KERNEL_SIZE + 1) * (w - KERNEL_SIZE + 1)
    return jnp.sum(partials[:, 0, 0]) / jnp.float32(count)


# ----------------------------- pure-JAX reference -----------------------------
def _contour_ref(images):
    window = (1, 1, KERNEL_SIZE, KERNEL_SIZE)
    strides = (1, 1, 1, 1)
    d = lax.reduce_window(images, -jnp.inf, lax.max, window, strides, "VALID")
    e = lax.reduce_window(images, jnp.inf, lax.min, window, strides, "VALID")
    return jnp.maximum(d - e, 0.0)


def _contour_loss_ref(outputs, targets):
    return jnp.mean((_contour_ref(outputs) - _contour_ref(targets)) ** 2)


if __name__ == "__main__":
    key = jax.random.PRNGKey(0)
    k1, k2, k3, k4, k5, k6 = jax.random.split(key, 6)

    # Primary test: N=2, C=4, H=W=16 (shapes implied by the module docstring).
    out_img = jax.random.normal(k1, (2, 4, 16, 16), dtype=jnp.float32)
    tgt_img = jax.random.normal(k2, (2, 4, 16, 16), dtype=jnp.float32)
    loss = jax.block_until_ready(contour_loss(out_img, tgt_img))
    ref = _contour_loss_ref(out_img, tgt_img)
    assert loss.shape == (), loss.shape
    assert jnp.allclose(loss, ref, rtol=1e-5, atol=1e-6), (loss, ref)

    # Secondary test: odd sizes exercise the column-wrap mask and the
    # one-plane-per-block / grid=nc path.
    out2 = jax.random.normal(k3, (1, 3, 10, 20), dtype=jnp.float32)
    tgt2 = jax.random.normal(k4, (1, 3, 10, 20), dtype=jnp.float32)
    loss2 = jax.block_until_ready(contour_loss(out2, tgt2))
    ref2 = _contour_loss_ref(out2, tgt2)
    assert jnp.allclose(loss2, ref2, rtol=1e-5, atol=1e-6), (loss2, ref2)

    # Third test: lane-aligned width (W = 128) exercises shift-by-128 row pass.
    out3 = jax.random.normal(k5, (1, 2, 8, 128), dtype=jnp.float32)
    tgt3 = jax.random.normal(k6, (1, 2, 8, 128), dtype=jnp.float32)
    loss3 = jax.block_until_ready(contour_loss(out3, tgt3))
    ref3 = _contour_loss_ref(out3, tgt3)
    assert jnp.allclose(loss3, ref3, rtol=1e-5, atol=1e-6), (loss3, ref3)

    print("KERNEL_OK")
</pallas_src>

<mosaic_0001>
module attributes {stable_mosaic.version = 11 : i64} {
  func.func @_contour_mse_kernel(%arg0: i32, %arg1: memref<1x4x256xf32, #tpu.memory_space<vmem>>, %arg2: memref<1x4x256xf32, #tpu.memory_space<vmem>>, %arg3: memref<1x8x128xf32, #tpu.memory_space<vmem>>) attributes {dimension_semantics = [#tpu.dimension_semantics<parallel>], iteration_bounds = array<i64: 2>, scalar_prefetch = 0 : i64, scratch_operands = 0 : i64, tpu.core_type = #tpu.core_type<tc>, window_params = [{transform_indices = @transform_0, window_bounds = array<i64: 1, 4, 256>}, {transform_indices = @transform_1, window_bounds = array<i64: 1, 4, 256>}, {transform_indices = @transform_2, window_bounds = array<i64: 1, 8, 128>}]} {
    %c0 = arith.constant 0 : index
    %c0_0 = arith.constant 0 : index
    %c0_1 = arith.constant 0 : index
    %0 = vector.load %arg1[%c0, %c0_0, %c0_1] : memref<1x4x256xf32, #tpu.memory_space<vmem>>, vector<1x4x256xf32>
    %1 = vector.shape_cast %0 : vector<1x4x256xf32> to vector<4x256xf32>
    %c0_2 = arith.constant 0 : index
    %c0_3 = arith.constant 0 : index
    %c0_4 = arith.constant 0 : index
    %2 = vector.load %arg2[%c0_2, %c0_3, %c0_4] : memref<1x4x256xf32, #tpu.memory_space<vmem>>, vector<1x4x256xf32>
    %3 = vector.shape_cast %2 : vector<1x4x256xf32> to vector<4x256xf32>
    %4 = vector.extract_strided_slice %1 {offsets = [0, 0], sizes = [4, 254], strides = [1, 1]} : vector<4x256xf32> to vector<4x254xf32>
    %5 = vector.extract_strided_slice %1 {offsets = [0, 1], sizes = [4, 254], strides = [1, 1]} : vector<4x256xf32> to vector<4x254xf32>
    %6 = vector.extract_strided_slice %1 {offsets = [0, 2], sizes = [4, 254], strides = [1, 1]} : vector<4x256xf32> to vector<4x254xf32>
    %7 = arith.maximumf %4, %5 : vector<4x254xf32>
    %8 = arith.maximumf %7, %6 : vector<4x254xf32>
    %9 = arith.minimumf %4, %5 : vector<4x254xf32>
    %10 = arith.minimumf %9, %6 : vector<4x254xf32>
    %11 = vector.extract_strided_slice %8 {offsets = [0, 0], sizes = [4, 222], strides = [1, 1]} : vector<4x254xf32> to vector<4x222xf32>
    %12 = vector.extract_strided_slice %8 {offsets = [0, 16], sizes = [4, 222], strides = [1, 1]} : vector<4x254xf32> to vector<4x222xf32>
    %13 = arith.maximumf %11, %12 : vector<4x222xf32>
    %14 = vector.extract_strided_slice %8 {offsets = [0, 32], sizes = [4, 222], strides = [1, 1]} : vector<4x254xf32> to vector<4x222xf32>
    %15 = arith.maximumf %13, %14 : vector<4x222xf32>
    %16 = vector.extract_strided_slice %10 {offsets = [0, 0], sizes = [4, 222], strides = [1, 1]} : vector<4x254xf32> to vector<4x222xf32>
    %17 = vector.extract_strided_slice %10 {offsets = [0, 16], sizes = [4, 222], strides = [1, 1]} : vector<4x254xf32> to vector<4x222xf32>
    %18 = arith.minimumf %16, %17 : vector<4x222xf32>
    %19 = vector.extract_strided_slice %10 {offsets = [0, 32], sizes = [4, 222], strides = [1, 1]} : vector<4x254xf32> to vector<4x222xf32>
    %20 = arith.minimumf %18, %19 : vector<4x222xf32>
    %21 = arith.subf %15, %20 : vector<4x222xf32>
    %22 = vector.extract_strided_slice %3 {offsets = [0, 0], sizes = [4, 254], strides = [1, 1]} : vector<4x256xf32> to vector<4x254xf32>
    %23 = vector.extract_strided_slice %3 {offsets = [0, 1], sizes = [4, 254], strides = [1, 1]} : vector<4x256xf32> to vector<4x254xf32>
    %24 = vector.extract_strided_slice %3 {offsets = [0, 2], sizes = [4, 254], strides = [1, 1]} : vector<4x256xf32> to vector<4x254xf32>
    %25 = arith.maximumf %22, %23 : vector<4x254xf32>
    %26 = arith.maximumf %25, %24 : vector<4x254xf32>
    %27 = arith.minimumf %22, %23 : vector<4x254xf32>
    %28 = arith.minimumf %27, %24 : vector<4x254xf32>
    %29 = vector.extract_strided_slice %26 {offsets = [0, 0], sizes = [4, 222], strides = [1, 1]} : vector<4x254xf32> to vector<4x222xf32>
    %30 = vector.extract_strided_slice %26 {offsets = [0, 16], sizes = [4, 222], strides = [1, 1]} : vector<4x254xf32> to vector<4x222xf32>
    %31 = arith.maximumf %29, %30 : vector<4x222xf32>
    %32 = vector.extract_strided_slice %26 {offsets = [0, 32], sizes = [4, 222], strides = [1, 1]} : vector<4x254xf32> to vector<4x222xf32>
    %33 = arith.maximumf %31, %32 : vector<4x222xf32>
    %34 = vector.extract_strided_slice %28 {offsets = [0, 0], sizes = [4, 222], strides = [1, 1]} : vector<4x254xf32> to vector<4x222xf32>
    %35 = vector.extract_strided_slice %28 {offsets = [0, 16], sizes = [4, 222], strides = [1, 1]} : vector<4x254xf32> to vector<4x222xf32>
    %36 = arith.minimumf %34, %35 : vector<4x222xf32>
    %37 = vector.extract_strided_slice %28 {offsets = [0, 32], sizes = [4, 222], strides = [1, 1]} : vector<4x254xf32> to vector<4x222xf32>
    %38 = arith.minimumf %36, %37 : vector<4x222xf32>
    %39 = arith.subf %33, %38 : vector<4x222xf32>
    %40 = arith.subf %21, %39 : vector<4x222xf32>
    %41 = tpu.iota {dimensions = array<i32: 1>} : vector<4x222xi32>
    %c16_i32 = arith.constant 16 : i32
    %c0_i32 = arith.constant 0 : i32
    %42 = arith.cmpi eq, %c16_i32, %c0_i32 : i32
    %c1_i32 = arith.constant 1 : i32
    %43 = arith.select %42, %c1_i32, %c16_i32 : i32
    %44 = vector.broadcast %43 : i32 to vector<4x222xi32>
    %45 = arith.remsi %41, %44 : vector<4x222xi32>
    %c0_i32_5 = arith.constant 0 : i32
    %46 = vector.broadcast %c0_i32_5 : i32 to vector<4x222xi32>
    %47 = arith.cmpi ne, %45, %46 : vector<4x222xi32>
    %c0_i32_6 = arith.constant 0 : i32
    %48 = vector.broadcast %c0_i32_6 : i32 to vector<4x222xi32>
    %49 = arith.cmpi slt, %45, %48 : vector<4x222xi32>
    %c0_i32_7 = arith.constant 0 : i32
    %50 = arith.cmpi slt, %43, %c0_i32_7 : i32
    %51 = vector.broadcast %50 : i1 to vector<4x222xi1>
    %52 = vector.broadcast %51 : vector<4x222xi1> to vector<4x222xi1>
    %53 = arith.xori %49, %52 : vector<4x222xi1>
    %54 = arith.andi %53, %47 : vector<4x222xi1>
    %55 = vector.broadcast %43 : i32 to vector<4x222xi32>
    %56 = arith.addi %45, %55 : vector<4x222xi32>
    %57 = arith.select %54, %56, %45 : vector<4x222xi1>, vector<4x222xi32>
    %c13_i32 = arith.constant 13 : i32
    %58 = vector.broadcast %c13_i32 : i32 to vector<4x222xi32>
    %59 = arith.cmpi sle, %57, %58 : vector<4x222xi32>
    %60 = arith.mulf %40, %40 : vector<4x222xf32>
    %cst = arith.constant 0.000000e+00 : f32
    %61 = vector.broadcast %cst : f32 to vector<4x222xf32>
    %62 = arith.select %59, %60, %61 : vector<4x222xi1>, vector<4x222xf32>
    %63 = vector.shape_cast %62 : vector<4x222xf32> to vector<1x4x222xf32>
    %cst_8 = arith.constant dense<0.000000e+00> : vector<1xf32>
    %64 = vector.multi_reduction <add>, %63, %cst_8 [1, 2] : vector<1x4x222xf32> to vector<1xf32>
    %65 = vector.shape_cast %64 : vector<1xf32> to vector<1x1x1xf32>
    %66 = vector.extract %65[0, 0, 0] : f32 from vector<1x1x1xf32>
    %67 = vector.broadcast %66 : f32 to vector<1x8x128xf32>
    %c0_9 = arith.constant 0 : index
    %c0_10 = arith.constant 0 : index
    %c0_11 = arith.constant 0 : index
    %68 = vector.load %arg3[%c0_9, %c0_10, %c0_11] : memref<1x8x128xf32, #tpu.memory_space<vmem>>, vector<1x8x128xf32>
    tpu.vector_store %arg3[%c0_9, %c0_10, %c0_11], %67 {strides = array<i32>} : memref<1x8x128xf32, #tpu.memory_space<vmem>>, vector<1x8x128xf32>,
    return
  }
  func.func @transform_0(%arg0: i32) -> (i32, i32, i32) {
    %c0_i32 = arith.constant 0 : i32
    %c0_i32_0 = arith.constant 0 : i32
    %c0_i32_1 = arith.constant 0 : i32
    return %arg0, %c0_i32, %c0_i32_0 : i32, i32, i32
  }
  func.func @transform_1(%arg0: i32) -> (i32, i32, i32) {
    %c0_i32 = arith.constant 0 : i32
    %c0_i32_0 = arith.constant 0 : i32
    %c0_i32_1 = arith.constant 0 : i32
    return %arg0, %c0_i32, %c0_i32_0 : i32, i32, i32
  }
  func.func @transform_2(%arg0: i32) -> (i32, i32, i32) {
    %c0_i32 = arith.constant 0 : i32
    %c0_i32_0 = arith.constant 0 : i32
    %c0_i32_1 = arith.constant 0 : i32
    return %arg0, %c0_i32, %c0_i32_0 : i32, i32, i32
  }
}

</mosaic_0001>

<llo_original>
// kernel: tpu_custom_call.1
$region0: #{tpu_custom_call.1}
  #allocation0 [shape = 'u32[]', space=smem, size = 0x4, offset = 0x4, fixed_abs, tag = 'smem constant byte address 0x4 - core index']
  #allocation1 [shape = 'u32[144,128]{1,0:T(1,128)}', space=vmem, size = 0x12000, scoped, tag = 'internal scratch']
  %s0 = inlined_call_operand.hbm [shape: f32[2,4,256], index: 0, kind: input, shape index: {}]
  %s1 = inlined_call_operand.hbm [shape: f32[2,4,256], index: 1, kind: input, shape index: {}]
  %s2 = inlined_call_operand.hbm [shape: f32[2,8,128], index: 2, kind: output, shape index: {}]
  %s3 = sld [smem:[#allocation0]]
  $region49: #{tpu_custom_call.1} parent=0
    _
  %s5 = ssub.s32 1, %s3
  %s6 = scalar_select 0, %s5, %s3
  $region1: #{tpu_custom_call.1} parent=0
    #allocation2 [shape = 'u8[8192]{0}', space=vmem, size = 0x2000, scoped, tag = 'input window, operand 0']
    #allocation3 [shape = 's32[2]{0}', space=sflag, size = 0x8, scoped, tag = 'scoped memory for tpu_custom_call.1']
    #allocation4 [shape = 's32[2]{0}', space=sflag, size = 0x8, scoped, tag = 'scoped memory for tpu_custom_call.1']
    #allocation5 [shape = 'u8[8192]{0}', space=vmem, size = 0x2000, scoped, tag = 'input window, operand 1']
    #allocation6 [shape = 's32[2]{0}', space=sflag, size = 0x8, scoped, tag = 'scoped memory for tpu_custom_call.1']
    #allocation7 [shape = 'u8[8192]{0}', space=vmem, size = 0x2000, scoped, tag = 'output window, operand 0']
    %7 = vsyncpa [#allocation3], 0
    %s8 = scalar_lea.sflag [#allocation3], 1
    %9 = vsyncpa %s8, 0
    %10 = vsyncpa [#allocation6], 0
    %s11 = scalar_lea.sflag [#allocation6], 1
    %12 = vsyncpa %s11, 0
    %13 = vsyncpa [#allocation4], 0
    %s14 = scalar_lea.sflag [#allocation4], 1
    %15 = vsyncpa %s14, 0
    loop: start=0, step=1, limit=4
    $region2: #{tpu_custom_call.1} parent=1 // loop_pre_header
      _
    $region3: #{tpu_custom_call.1} parent=1 // loop_header
      %s17 = sphi 0, %s21
      %p18 = scmp.ge.s32.totalorder %s17, 4
      %s27 = sphi 0, %s29
      %s30 = sphi 0, %s27
      %s31 = sphi 0, %s30
      %s47 = sphi 0, %s31
      %s53 = sphi 0, %s55
      %s56 = sphi 0, %s53
      %s57 = sphi 0, %s56
      %s73 = sphi 0, %s57
      %s79 = sphi 0, %s81
      %s82 = sphi 0, %s79
      %s83 = sphi 0, %s82
      %s99 = sphi 0, %s83
    $region4: #{tpu_custom_call.1} parent=1 // loop_header_branch
      %20 = sbr.rel (%p18) target = $region8
    $region5: #{tpu_custom_call.1} parent=1 // loop_body
      %s22 = ssub.s32 %s17, 1
      %s23 = ssub.s32 %s17, 2
      %s24 = sadd.s32 %s17, 1
      %s25 = ssub.s32 %s17, %s24
      %p26 = scmp.eq.s32.totalorder %s25, 0
      %s28 = sadd.s32 %s27, 1
      %s29 = scalar_select %p26, %s27, %s28
      %p32 = pneg %p26
      %p33 = scmp.eq.s32.totalorder %s17, 1
      %p34 = por %p32, %p33
      %p35 = scmp.ne.s32.totalorder %s27, %s30
      %p36 = scmp.eq.s32.totalorder %s17, 0
      %p37 = por %p35, %p36
      %p38 = scmp.ne.s32.totalorder %s27, %s30
      %p39 = scmp.eq.s32.totalorder %s22, 1
      %p40 = por %p38, %p39
      %p41 = scmp.ne.s32.totalorder %s30, %s31
      %p42 = scmp.eq.s32.totalorder %s22, 0
      %p43 = por %p41, %p42
      %p44 = scmp.ne.s32.totalorder %s30, %s31
      %p45 = scmp.eq.s32.totalorder %s23, 1
      %p46 = por %p44, %p45
      %p48 = scmp.ne.s32.totalorder %s31, %s47
      %p49 = scmp.eq.s32.totalorder %s23, 0
      %p50 = por %p48, %p49
      %s51 = ssub.s32 %s17, %s24
      %p52 = scmp.eq.s32.totalorder %s51, 0
      %s54 = sadd.s32 %s53, 1
      %s55 = scalar_select %p52, %s53, %s54
      %p58 = pneg %p52
      %p59 = scmp.eq.s32.totalorder %s17, 1
      %p60 = por %p58, %p59
      %p61 = scmp.ne.s32.totalorder %s53, %s56
      %p62 = scmp.eq.s32.totalorder %s17, 0
      %p63 = por %p61, %p62
      %p64 = scmp.ne.s32.totalorder %s53, %s56
      %p65 = scmp.eq.s32.totalorder %s22, 1
      %p66 = por %p64, %p65
      %p67 = scmp.ne.s32.totalorder %s56, %s57
      %p68 = scmp.eq.s32.totalorder %s22, 0
      %p69 = por %p67, %p68
      %p70 = scmp.ne.s32.totalorder %s56, %s57
      %p71 = scmp.eq.s32.totalorder %s23, 1
      %p72 = por %p70, %p71
      %p74 = scmp.ne.s32.totalorder %s57, %s73
      %p75 = scmp.eq.s32.totalorder %s23, 0
      %p76 = por %p74, %p75
      %s77 = ssub.s32 %s17, %s24
      %p78 = scmp.eq.s32.totalorder %s77, 0
      %s80 = sadd.s32 %s79, 1
      %s81 = scalar_select %p78, %s79, %s80
      %p84 = pneg %p78
      %p85 = scmp.eq.s32.totalorder %s17, 1
      %p86 = por %p84, %p85
      %p87 = scmp.ne.s32.totalorder %s79, %s82
      %p88 = scmp.eq.s32.totalorder %s17, 0
      %p89 = por %p87, %p88
      %p90 = scmp.ne.s32.totalorder %s79, %s82
      %p91 = scmp.eq.s32.totalorder %s22, 1
      %p92 = por %p90, %p91
      %p93 = scmp.ne.s32.totalorder %s82, %s83
      %p94 = scmp.eq.s32.totalorder %s22, 0
      %p95 = por %p93, %p94
      %p96 = scmp.ne.s32.totalorder %s82, %s83
      %p97 = scmp.eq.s32.totalorder %s23, 1
      %p98 = por %p96, %p97
      %p100 = scmp.ne.s32.totalorder %s83, %s99
      %p101 = scmp.eq.s32.totalorder %s23, 0
      %p102 = por %p100, %p101
      %p103 = scmp.le.s32.totalorder 1, %s17
      %p104 = scmp.lt.s32.totalorder %s17, 3
      %p105 = pnand %p103, %p104
      %p106 = pneg %p105
      // Predicated region
      $region9: #{tpu_custom_call.1} parent=5 // pred_check
        _
      $region10: #{tpu_custom_call.1} parent=5 // pred_check_branch
        %108 = sbr.rel (%p105) target = $region12
      $region11: #{tpu_custom_call.1} parent=5 // pred_region
        %s109 = ssub.s32 %s17, 1
      $region12: #{tpu_custom_call.1} parent=5 // pred_fallthru
        _
      %p110 = scmp.lt.s32.totalorder %s17, 2
      // Predicated region
      $region13: #{tpu_custom_call.1} parent=5 // pred_check
        %p111 = pneg %p110
      $region14: #{tpu_custom_call.1} parent=5 // pred_check_branch
        %113 = sbr.rel (%p111) target = $region16
      $region15: #{tpu_custom_call.1} parent=5 // pred_region
        // Predicated region
        $region17: #{tpu_custom_call.1} parent=15 // pred_check
          %p114 = pneg %p37
        $region18: #{tpu_custom_call.1} parent=15 // pred_check_branch
          %116 = sbr.rel (%p114) target = $region20
        $region19: #{tpu_custom_call.1} parent=15 // pred_region
          %s117 = sand.u32 %s27, 1
          %s118 = scalar_lea.sflag [#allocation3], %s117
          %s119 = sand.u32 %s27, 1
          %s120 = smul.addr %s119, 8
          %s121 = scalar_lea.vmem [#allocation2], %s120
          %s123 = ssub.s32 128, 128
          %124 = vsyncadd %s118, %s123
          %s125 = smul.addr %s17, 2
          %s126 = smul.addr %s125, 64
          %s127 = scalar_lea.hbm %s0, %s126
          %s129 = sshll.u32 %s121, 4
          %s130 = int_to_ptr.vmem [resolvable:$true] %s129
          %132 = dma.hbm_to_vmem [thread:$0]  %s127, 128, %s130, %s118
        $region20: #{tpu_custom_call.1} parent=15 // pred_fallthru
          _
        // Predicated region
        $region21: #{tpu_custom_call.1} parent=15 // pred_check
          %p133 = pneg %p63
        $region22: #{tpu_custom_call.1} parent=15 // pred_check_branch
          %135 = sbr.rel (%p133) target = $region24
        $region23: #{tpu_custom_call.1} parent=15 // pred_region
          %s136 = sand.u32 %s53, 1
          %s137 = scalar_lea.sflag [#allocation6], %s136
          %s138 = sand.u32 %s53, 1
          %s139 = smul.addr %s138, 8
          %s140 = scalar_lea.vmem [#allocation5], %s139
          %s142 = ssub.s32 128, 128
          %143 = vsyncadd %s137, %s142
          %s144 = smul.addr %s17, 2
          %s145 = smul.addr %s144, 64
          %s146 = scalar_lea.hbm %s1, %s145
          %s148 = sshll.u32 %s140, 4
          %s149 = int_to_ptr.vmem [resolvable:$true] %s148
          %151 = dma.hbm_to_vmem [thread:$0]  %s146, 128, %s149, %s137
        $region24: #{tpu_custom_call.1} parent=15 // pred_fallthru
          _
      $region16: #{tpu_custom_call.1} parent=5 // pred_fallthru
        _
      %p152 = scmp.le.s32.totalorder 1, %s17
      %p153 = scmp.lt.s32.totalorder %s17, 3
      %p154 = pnand %p152, %p153
      %p155 = pneg %p154
      // Predicated region
      $region25: #{tpu_custom_call.1} parent=5 // pred_check
        _
      $region26: #{tpu_custom_call.1} parent=5 // pred_check_branch
        %157 = sbr.rel (%p154) target = $region28
      $region27: #{tpu_custom_call.1} parent=5 // pred_region
        %s158 = ssub.s32 %s17, 1
        %s159 = sand.u32 %s30, 1
        %s160 = scalar_lea.sflag [#allocation3], %s159
        %s161 = sand.u32 %s30, 1
        %s162 = smul.addr %s161, 8
        %s163 = scalar_lea.vmem [#allocation2], %s162
        // Predicated region
        $region29: #{tpu_custom_call.1} parent=27 // pred_check
          %p164 = pneg %p43
        $region30: #{tpu_custom_call.1} parent=27 // pred_check_branch
          %166 = sbr.rel (%p164) target = $region32
        $region31: #{tpu_custom_call.1} parent=27 // pred_region
          %167 = dma.done %s160, 128
        $region32: #{tpu_custom_call.1} parent=27 // pred_fallthru
          _
        %s168 = sand.u32 %s56, 1
        %s169 = scalar_lea.sflag [#allocation6], %s168
        %s170 = sand.u32 %s56, 1
        %s171 = smul.addr %s170, 8
        %s172 = scalar_lea.vmem [#allocation5], %s171
        // Predicated region
        $region33: #{tpu_custom_call.1} parent=27 // pred_check
          %p173 = pneg %p69
        $region34: #{tpu_custom_call.1} parent=27 // pred_check_branch
          %175 = sbr.rel (%p173) target = $region36
        $region35: #{tpu_custom_call.1} parent=27 // pred_region
          %176 = dma.done %s169, 128
        $region36: #{tpu_custom_call.1} parent=27 // pred_fallthru
          _
        %s177 = sand.u32 %s30, 1
        %s178 = scalar_lea.sflag [#allocation3], %s177
        %s179 = sand.u32 %s30, 1
        %s180 = smul.addr %s179, 8
        %s181 = scalar_lea.vmem [#allocation2], %s180
        %p182 = pneg %p43
        %p183 = pneg %p40
        %s184 = sand.u32 %s56, 1
        %s185 = scalar_lea.sflag [#allocation6], %s184
        %s186 = sand.u32 %s56, 1
        %s187 = smul.addr %s186, 8
        %s188 = scalar_lea.vmem [#allocation5], %s187
        %p189 = pneg %p69
        %p190 = pneg %p66
        %p191 = pneg %p95
        %p192 = pneg %p92
        %s193 = sand.u32 %s82, 1
        %s194 = scalar_lea.sflag [#allocation4], %s193
        %s195 = sand.u32 %s82, 1
        %s196 = smul.addr %s195, 8
        %s197 = scalar_lea.vmem [#allocation7], %s196
        %v198 = vld [vmem:[%s163] sm:$0xff]
        %v199 = vld [vmem:[%s172] sm:$0xff]
        %201 = vrot.lane.b32.xlu0 %v198, 127
        %v202 = vpop.permute.xlu0 %201
        %v203 = vrot.slane %v202, 4
        %vm204 = vcmask 1039360
        %v205 = vsel %vm204, %v202, %v203
        %v207 = vmax.f32 %v198, %v205
        %208 = vrot.lane.b32.xlu0 %v198, 126
        %v209 = vpop.permute.xlu0 %208
        %v210 = vrot.slane %v209, 4
        %vm211 = vcmask 1031168
        %v212 = vsel %vm211, %v209, %v210
        %v214 = vmax.f32 %v207, %v212
        %v215 = vmin.f32 %v198, %v205
        %v216 = vmin.f32 %v215, %v212
        %218 = vrot.lane.b32.xlu0 %v214, 112
        %v219 = vpop.permute.xlu0 %218
        %v220 = vrot.slane %v219, 4
        %vm221 = vcmask 916480
        %v222 = vsel %vm221, %v219, %v220
        %v224 = vmax.f32 %v214, %v222
        %225 = vrot.lane.b32.xlu0 %v214, 96
        %v226 = vpop.permute.xlu0 %225
        %v227 = vrot.slane %v226, 4
        %vm228 = vcmask 785408
        %v229 = vsel %vm228, %v226, %v227
        %v231 = vmax.f32 %v224, %v229
        %233 = vrot.lane.b32.xlu0 %v216, 112
        %v234 = vpop.permute.xlu0 %233
        %v235 = vrot.slane %v234, 4
        %v236 = vsel %vm221, %v234, %v235
        %v238 = vmin.f32 %v216, %v236
        %239 = vrot.lane.b32.xlu0 %v216, 96
        %v240 = vpop.permute.xlu0 %239
        %v241 = vrot.slane %v240, 4
        %v242 = vsel %vm228, %v240, %v241
        %v244 = vmin.f32 %v238, %v242
        %v245 = vsub.f32 %v231, %v244
        %247 = vrot.lane.b32.xlu0 %v199, 127
        %v248 = vpop.permute.xlu0 %247
        %v249 = vrot.slane %v248, 4
        %v250 = vsel %vm204, %v248, %v249
        %v252 = vmax.f32 %v199, %v250
        %253 = vrot.lane.b32.xlu0 %v199, 126
        %v254 = vpop.permute.xlu0 %253
        %v255 = vrot.slane %v254, 4
        %v256 = vsel %vm211, %v254, %v255
        %v258 = vmax.f32 %v252, %v256
        %v259 = vmin.f32 %v199, %v250
        %v260 = vmin.f32 %v259, %v256
        %262 = vrot.lane.b32.xlu0 %v258, 112
        %v263 = vpop.permute.xlu0 %262
        %v264 = vrot.slane %v263, 4
        %v265 = vsel %vm221, %v263, %v264
        %v267 = vmax.f32 %v258, %v265
        %268 = vrot.lane.b32.xlu0 %v258, 96
        %v269 = vpop.permute.xlu0 %268
        %v270 = vrot.slane %v269, 4
        %v271 = vsel %vm228, %v269, %v270
        %v273 = vmax.f32 %v267, %v271
        %275 = vrot.lane.b32.xlu0 %v260, 112
        %v276 = vpop.permute.xlu0 %275
        %v277 = vrot.slane %v276, 4
        %v278 = vsel %vm221, %v276, %v277
        %v280 = vmin.f32 %v260, %v278
        %281 = vrot.lane.b32.xlu0 %v260, 96
        %v282 = vpop.permute.xlu0 %281
        %v283 = vrot.slane %v282, 4
        %v284 = vsel %vm228, %v282, %v283
        %v286 = vmin.f32 %v280, %v284
        %v287 = vsub.f32 %v273, %v286
        %v288 = vsub.f32 %v245, %v287
        %v289 = vlaneseq
        %v290 = vand.u32 %v289, 127
        %v291 = vadd.s32 %v290, 128
        %vm292 = vcmp.lt.s32.totalorder %v290, 0
        %v293 = vsub.s32 0, %v290
        %v294 = vsel %vm292, %v293, %v290
        %v295 = vshrl.u32 %v294, 4
        %v296 = vand.u32 %v294, 15
        %v297 = vsub.s32 0, %v296
        %v298 = vsel %vm292, %v297, %v296
        %vm299 = vcmp.lt.s32.totalorder %v291, 0
        %v300 = vsub.s32 0, %v291
        %v301 = vsel %vm299, %v300, %v291
        %v302 = vshrl.u32 %v301, 4
        %v303 = vand.u32 %v301, 15
        %v304 = vsub.s32 0, %v303
        %v305 = vsel %vm299, %v304, %v303
        %vm306 = vcmp.ne.s32.totalorder %v298, 0
        %vm307 = vcmp.ne.s32.totalorder %v305, 0
        %vm308 = vcmp.lt.s32.totalorder %v298, 0
        %vm309 = vcmp.lt.s32.totalorder %v305, 0
        %vm310 = vmand %vm308, %vm306
        %vm311 = vmand %vm309, %vm307
        %v312 = vadd.s32 %v298, 16
        %v313 = vadd.s32 %v305, 16
        %v314 = vsel %vm310, %v312, %v298
        %v315 = vsel %vm311, %v313, %v305
        %vm316 = vcmp.le.s32.totalorder %v314, 13
        %vm317 = vcmp.le.s32.totalorder %v315, 13
        %v318 = vmul.f32 %v288, %v288
        %v320 = vcombine.high %v318, %v318
        %v322 = vsel %vm316, %v318, 0.0
        %v323 = vsel %vm317, %v320, 0.0
        %vm324 = vcmask 1043456
        %v325 = vsel %vm324, %v322, 0.0
        %vm326 = vcmask 764928
        %v327 = vsel %vm326, %v323, 0.0
        %v328 = vadd.f32 %v325, %v327
        %329 = vadd.xlane.f32.xlu0 %v328
        %v330 = vpop.xlane.xlu0 %329
        %v331 = vrot.slane %v330, 4
        %v332 = vadd.f32 %v330, %v331
        %v333 = vrot.slane %v332, 2
        %v334 = vadd.f32 %v332, %v333
        %v335 = vrot.slane %v334, 1
        %v336 = vadd.f32 %v334, %v335
        %s337 = vtos %v336
        %v338 = vstv %s337
        %339 = vst [vmem:[%s197] sm:$0xff] %v338
        %s340 = sand.u32 %s82, 1
        %s341 = scalar_lea.sflag [#allocation4], %s340
        %s342 = sand.u32 %s82, 1
        %s343 = smul.addr %s342, 8
        %s344 = scalar_lea.vmem [#allocation7], %s343
        // Predicated region
        $region37: #{tpu_custom_call.1} parent=27 // pred_check
          %p345 = pneg %p92
        $region38: #{tpu_custom_call.1} parent=27 // pred_check_branch
          %347 = sbr.rel (%p345) target = $region40
        $region39: #{tpu_custom_call.1} parent=27 // pred_region
          %s349 = ssub.s32 128, 128
          %350 = vsyncadd %s341, %s349
          %s351 = smul.addr %s22, 128
          %s352 = scalar_lea.hbm %s2, %s351
          %s354 = sshll.u32 %s344, 4
          %s355 = int_to_ptr.vmem [resolvable:$true] %s354
          %357 = dma.vmem_to_hbm [thread:$0]  %s355, 128, %s352, %s341
        $region40: #{tpu_custom_call.1} parent=27 // pred_fallthru
          _
      $region28: #{tpu_custom_call.1} parent=5 // pred_fallthru
        _
      %p358 = scmp.le.s32.totalorder 2, %s17
      // Predicated region
      $region41: #{tpu_custom_call.1} parent=5 // pred_check
        %p359 = pneg %p358
      $region42: #{tpu_custom_call.1} parent=5 // pred_check_branch
        %361 = sbr.rel (%p359) target = $region44
      $region43: #{tpu_custom_call.1} parent=5 // pred_region
        %s362 = ssub.s32 %s17, 2
        // Predicated region
        $region45: #{tpu_custom_call.1} parent=43 // pred_check
          %p363 = pneg %p98
        $region46: #{tpu_custom_call.1} parent=43 // pred_check_branch
          %365 = sbr.rel (%p363) target = $region48
        $region47: #{tpu_custom_call.1} parent=43 // pred_region
          %s366 = sand.u32 %s83, 1
          %s367 = scalar_lea.sflag [#allocation4], %s366
          %s368 = sand.u32 %s83, 1
          %s369 = smul.addr %s368, 8
          %s370 = scalar_lea.vmem [#allocation7], %s369
          %371 = dma.done %s367, 128
        $region48: #{tpu_custom_call.1} parent=43 // pred_fallthru
          _
      $region44: #{tpu_custom_call.1} parent=5 // pred_fallthru
        _
    $region6: #{tpu_custom_call.1} parent=1 // loop_footer
      %s21 = sadd.s32 1, %s17
    $region7: #{tpu_custom_call.1} parent=1 // loop_footer_branch
      %16 = sbr.rel target = $region3
    $region8: #{tpu_custom_call.1} parent=1 // loop_exit
      _
    %372 = vsyncpa [#allocation3], 1
    %s373 = scalar_lea.sflag [#allocation3], 1
    %374 = vsyncpa %s373, 1
    %375 = vsyncpa [#allocation6], 1
    %s376 = scalar_lea.sflag [#allocation6], 1
    %377 = vsyncpa %s376, 1
    %378 = vsyncpa [#allocation4], 1
    %s379 = scalar_lea.sflag [#allocation4], 1
    %380 = vsyncpa %s379, 1

</llo_original>
